<compile_context>
chip_gen: v7x
topology: tpu7x:2x2x1
jax: 0.10.0
libtpu: 0.0.40
codegen_flags: <defaults>
</compile_context>

<pallas_src>
import functools
import math

import jax
import jax.numpy as jnp
import numpy as np
from jax.experimental import pallas as pl
from jax.experimental.pallas import tpu as pltpu


def _cdiv(a, b):
    return -(-a // b)


def _round_up(x, m):
    return ((x + m - 1) // m) * m


def _macro_soft_f1_kernel(x_ref, t_ref, out_ref,
                          spt_ref, sp_ref, st_ref, *,
                          consider_true_negative,
                          sigmoid_is_applied_to_input,
                          fold_r, num_classes, n_rows,
                          rows_tile, valid_rows, needs_mask):
    i = pl.program_id(0)

    @pl.when(i == 0)
    def _init():
        spt_ref[...] = jnp.zeros_like(spt_ref)
        sp_ref[...] = jnp.zeros_like(sp_ref)
        st_ref[...] = jnp.zeros_like(st_ref)

    x = x_ref[...].astype(jnp.float32)
    t = t_ref[...].astype(jnp.float32)          # target.float()

    if sigmoid_is_applied_to_input:
        p = x
    else:
        # sigmoid(x) == 0.5 * tanh(0.5 * x) + 0.5  -> single EUP op per vreg.
        p = 0.5 * jnp.tanh(0.5 * x) + 0.5

    if needs_mask:
        # Mask the ragged tail rows of the last tile (contents of the block
        # beyond the array are undefined).  Mask BOTH p and t so garbage /
        # NaN never reaches the sums.
        row = jax.lax.broadcasted_iota(jnp.int32, p.shape, 0)
        valid = valid_rows - i * rows_tile      # >= rows_tile on full tiles
        mask = row < valid
        p = jnp.where(mask, p, 0.0)
        t = jnp.where(mask, t, 0.0)

    # Three streaming sums over this lane-dense batch tile.
    spt_ref[...] += jnp.sum(p * t, axis=0, keepdims=True)   # sum(p * t)
    sp_ref[...] += jnp.sum(p, axis=0, keepdims=True)        # sum(p)
    st_ref[...] += jnp.sum(t, axis=0, keepdims=True)        # sum(t)

    @pl.when(i == pl.num_programs(0) - 1)
    def _finalize():
        # Un-fold the lane-folded accumulators: (1, fold_r * C) -> (1, C),
        # summing the fold_r lane groups (static slices, once per call).
        def _unfold_sum(ref):
            s = ref[:, 0:num_classes]
            for k in range(1, fold_r):
                s = s + ref[:, k * num_classes:(k + 1) * num_classes]
            return s

        TP = _unfold_sum(spt_ref)
        SP = _unfold_sum(sp_ref)
        ST = _unfold_sum(st_ref)

        # Exact algebraic forms of the module's definitions:
        #   FP = sum((1 - p) * t)       = sum(t) - sum(p * t)
        #   FN = sum(p * (1 - t))       = sum(p) - sum(p * t)
        #   TN = sum((1 - p) * (1 - t)) = N - sum(p) - sum(t) + sum(p * t)
        FP = ST - TP
        FN = SP - TP
        f1_class1 = 2.0 * TP / (2.0 * TP + FP + FN + 1e-08)
        loss = 1.0 - f1_class1
        if consider_true_negative:
            TN = jnp.float32(n_rows) - SP - ST + TP
            f1_class0 = 2.0 * TN / (2.0 * TN + FP + FN + 1e-08)
            loss = (loss + (1.0 - f1_class0)) * 0.5
        out_ref[...] = jnp.zeros_like(out_ref) + jnp.mean(loss)


def macro_soft_f1_loss(input_, target, *,
                       consider_true_negative=True,
                       sigmoid_is_applied_to_input=False,
                       input_pipeline_budget_bytes=16 * 1024 * 1024):
    """Pallas implementation of MacroSoftF1Loss.forward.  Returns scalar f32.

    Perf note: this kernel is HBM-bandwidth-bound.  For best performance pass
    bf16 `input_` and bf16 `target` (0/1 targets are exact in bf16); the
    kernel upcasts to f32 for accumulation.  Do not cast to bf16 here in a
    wrapper — that would add an un-hidden full read+write XLA pass.
    """
    B, C = input_.shape
    assert target.shape == (B, C)

    # ---- lane folding: r batch rows folded into lanes so (r*C) % 128 == 0 ---
    fold_r = 1 if C % 128 == 0 else 128 // math.gcd(C, 128)
    if fold_r > 1 and B % fold_r != 0:
        fold_r = 1      # unfolded fallback — same HBM bytes, still DMA-bound
    Cp = fold_r * C
    rows = B // fold_r                    # folded rows (== B when fold_r == 1)

    # Free, layout-preserving reshapes (no HBM copy).
    x_f = input_.reshape(rows, Cp)
    t_f = target.reshape(rows, Cp)

    # ---- tile sizing ---------------------------------------------------------
    in_bytes = jnp.dtype(input_.dtype).itemsize
    t_bytes = jnp.dtype(target.dtype).itemsize
    bytes_per_row = Cp * (in_bytes + t_bytes)
    # Budget covers 2 pipeline buffers for each of the 2 inputs.
    max_rows = max(8, (input_pipeline_budget_bytes // (2 * bytes_per_row)) // 8 * 8)

    if rows <= max_rows:
        # Whole problem fits one exact block: full-dim block shapes are always
        # legal (no (8,128) divisibility requirement) and no tail masking.
        rows_tile = rows
        grid_steps = 1
        needs_mask = False
    else:
        # Balanced tiles: the last (partial) tile wastes fewer than 8 rows.
        n_steps = _cdiv(rows, max_rows)
        rows_tile = _round_up(_cdiv(rows, n_steps), 8)
        grid_steps = _cdiv(rows, rows_tile)
        needs_mask = (rows % rows_tile) != 0

    kernel = functools.partial(
        _macro_soft_f1_kernel,
        consider_true_negative=consider_true_negative,
        sigmoid_is_applied_to_input=sigmoid_is_applied_to_input,
        fold_r=fold_r, num_classes=C, n_rows=B,
        rows_tile=rows_tile, valid_rows=rows, needs_mask=needs_mask,
    )

    pipeline_bytes = 2 * rows_tile * bytes_per_row
    vmem_limit = int(min(64 * 1024 * 1024,
                         max(32 * 1024 * 1024,
                             pipeline_bytes + 8 * 1024 * 1024)))

    out = pl.pallas_call(
        kernel,
        out_shape=jax.ShapeDtypeStruct((1, 128), jnp.float32),
        grid_spec=pltpu.PrefetchScalarGridSpec(
            num_scalar_prefetch=0,
            grid=(grid_steps,),
            in_specs=[
                pl.BlockSpec((rows_tile, Cp), lambda i: (i, 0)),
                pl.BlockSpec((rows_tile, Cp), lambda i: (i, 0)),
            ],
            out_specs=pl.BlockSpec((1, 128), lambda i: (0, 0)),
            scratch_shapes=[
                pltpu.VMEM((1, Cp), jnp.float32),   # sum(p * t)
                pltpu.VMEM((1, Cp), jnp.float32),   # sum(p)
                pltpu.VMEM((1, Cp), jnp.float32),   # sum(t)
            ],
        ),
        compiler_params=pltpu.CompilerParams(
            dimension_semantics=("arbitrary",),     # batch is a reduction axis
            vmem_limit_bytes=vmem_limit,
        ),
    )(x_f, t_f)
    return out[0, 0]


def _reference(input_, target, consider_true_negative, sigmoid_is_applied_to_input):
    """Pure-JAX reference matching the PyTorch forward exactly."""
    t = target.astype(jnp.float32)
    p = input_ if sigmoid_is_applied_to_input else jax.nn.sigmoid(input_)
    TP = jnp.sum(p * t, axis=0)
    FP = jnp.sum((1 - p) * t, axis=0)
    FN = jnp.sum(p * (1 - t), axis=0)
    f1_1 = 2 * TP / (2 * TP + FP + FN + 1e-08)
    loss1 = 1 - f1_1
    if consider_true_negative:
        TN = jnp.sum((1 - p) * (1 - t), axis=0)
        f1_0 = 2 * TN / (2 * TN + FP + FN + 1e-08)
        loss = (1 - f1_0 + loss1) * 0.5
    else:
        loss = loss1
    return jnp.mean(loss)


if __name__ == "__main__":
    key = jax.random.PRNGKey(0)

    def _make(B, C, k):
        k1, k2 = jax.random.split(k)
        logits = jax.random.normal(k1, (B, C), dtype=jnp.float32)
        tgt = (jax.random.uniform(k2, (B, C)) > 0.5).astype(jnp.float32)
        return logits, tgt

    k0, k1, k2 = jax.random.split(key, 3)

    # Config 1: small shape, single exact folded block; sigmoid in-kernel, TN on.
    logits, target = _make(32, 16, k0)
    loss = jax.block_until_ready(macro_soft_f1_loss(
        logits, target,
        consider_true_negative=True, sigmoid_is_applied_to_input=False))
    ref = _reference(logits, target, True, False)
    np.testing.assert_allclose(np.asarray(loss), np.asarray(ref),
                               rtol=1e-5, atol=1e-5)

    # Config 2: probabilities already given, no true-negative term.
    probs = jax.nn.sigmoid(logits)
    loss = jax.block_until_ready(macro_soft_f1_loss(
        probs, target,
        consider_true_negative=False, sigmoid_is_applied_to_input=True))
    ref = _reference(probs, target, False, True)
    np.testing.assert_allclose(np.asarray(loss), np.asarray(ref),
                               rtol=1e-5, atol=1e-5)

    # Config 3: multi-tile folded path with a ragged (in-kernel masked) tail.
    logits3, target3 = _make(1000, 16, k1)
    loss = jax.block_until_ready(macro_soft_f1_loss(
        logits3, target3,
        consider_true_negative=True, sigmoid_is_applied_to_input=False,
        input_pipeline_budget_bytes=64 * 1024))   # force several grid steps
    ref = _reference(logits3, target3, True, False)
    np.testing.assert_allclose(np.asarray(loss), np.asarray(ref),
                               rtol=1e-5, atol=1e-5)

    # Config 4: B not divisible by the fold factor -> unfolded fallback,
    # multi-tile with a masked tail.
    logits4, target4 = _make(37, 16, k2)
    loss = jax.block_until_ready(macro_soft_f1_loss(
        logits4, target4,
        consider_true_negative=True, sigmoid_is_applied_to_input=False,
        input_pipeline_budget_bytes=4 * 1024))
    ref = _reference(logits4, target4, True, False)
    np.testing.assert_allclose(np.asarray(loss), np.asarray(ref),
                               rtol=1e-5, atol=1e-5)

    print("KERNEL_OK")
</pallas_src>

<mosaic_0001>
module attributes {stable_mosaic.version = 11 : i64} {
  func.func @_macro_soft_f1_kernel(%arg0: i32, %arg1: memref<4x128xf32, #tpu.memory_space<vmem>>, %arg2: memref<4x128xf32, #tpu.memory_space<vmem>>, %arg3: memref<1x128xf32, #tpu.memory_space<vmem>>, %arg4: memref<1x128xf32, #tpu.memory_space<vmem>>, %arg5: memref<1x128xf32, #tpu.memory_space<vmem>>, %arg6: memref<1x128xf32, #tpu.memory_space<vmem>>) attributes {dimension_semantics = [#tpu.dimension_semantics<arbitrary>], iteration_bounds = array<i64: 1>, scalar_prefetch = 0 : i64, scratch_operands = 3 : i64, tpu.core_type = #tpu.core_type<tc>, window_params = [{transform_indices = @transform_0, window_bounds = array<i64: 4, 128>}, {transform_indices = @transform_1, window_bounds = array<i64: 4, 128>}, {pipeline_mode = #tpu.pipeline_mode<synchronous>, transform_indices = @transform_2, window_bounds = array<i64: 1, 128>}]} {
    %c0_i32 = arith.constant 0 : i32
    %0 = arith.cmpi eq, %arg0, %c0_i32 : i32
    %1 = arith.extui %0 : i1 to i32
    %c0_i32_0 = arith.constant 0 : i32
    %2 = arith.cmpi ne, %1, %c0_i32_0 : i32
    scf.if %2 {
      %cst_23 = arith.constant 0.000000e+00 : f32
      %31 = vector.broadcast %cst_23 : f32 to vector<1x128xf32>
      %c0_24 = arith.constant 0 : index
      %c0_25 = arith.constant 0 : index
      %32 = vector.load %arg4[%c0_24, %c0_25] : memref<1x128xf32, #tpu.memory_space<vmem>>, vector<1x128xf32>
      tpu.vector_store %arg4[%c0_24, %c0_25], %31 {strides = array<i32>} : memref<1x128xf32, #tpu.memory_space<vmem>>, vector<1x128xf32>,
      %cst_26 = arith.constant 0.000000e+00 : f32
      %33 = vector.broadcast %cst_26 : f32 to vector<1x128xf32>
      %c0_27 = arith.constant 0 : index
      %c0_28 = arith.constant 0 : index
      %34 = vector.load %arg5[%c0_27, %c0_28] : memref<1x128xf32, #tpu.memory_space<vmem>>, vector<1x128xf32>
      tpu.vector_store %arg5[%c0_27, %c0_28], %33 {strides = array<i32>} : memref<1x128xf32, #tpu.memory_space<vmem>>, vector<1x128xf32>,
      %cst_29 = arith.constant 0.000000e+00 : f32
      %35 = vector.broadcast %cst_29 : f32 to vector<1x128xf32>
      %c0_30 = arith.constant 0 : index
      %c0_31 = arith.constant 0 : index
      %36 = vector.load %arg6[%c0_30, %c0_31] : memref<1x128xf32, #tpu.memory_space<vmem>>, vector<1x128xf32>
      tpu.vector_store %arg6[%c0_30, %c0_31], %35 {strides = array<i32>} : memref<1x128xf32, #tpu.memory_space<vmem>>, vector<1x128xf32>,
    } else {
    }
    %c0 = arith.constant 0 : index
    %c0_1 = arith.constant 0 : index
    %3 = vector.load %arg1[%c0, %c0_1] : memref<4x128xf32, #tpu.memory_space<vmem>>, vector<4x128xf32>
    %c0_2 = arith.constant 0 : index
    %c0_3 = arith.constant 0 : index
    %4 = vector.load %arg2[%c0_2, %c0_3] : memref<4x128xf32, #tpu.memory_space<vmem>>, vector<4x128xf32>
    %cst = arith.constant 5.000000e-01 : f32
    %5 = vector.broadcast %cst : f32 to vector<4x128xf32>
    %6 = arith.mulf %5, %3 : vector<4x128xf32>
    %7 = math.tanh %6 : vector<4x128xf32>
    %cst_4 = arith.constant 5.000000e-01 : f32
    %8 = vector.broadcast %cst_4 : f32 to vector<4x128xf32>
    %9 = arith.mulf %8, %7 : vector<4x128xf32>
    %cst_5 = arith.constant 5.000000e-01 : f32
    %10 = vector.broadcast %cst_5 : f32 to vector<4x128xf32>
    %11 = arith.addf %9, %10 : vector<4x128xf32>
    %c0_6 = arith.constant 0 : index
    %c0_7 = arith.constant 0 : index
    %12 = vector.load %arg4[%c0_6, %c0_7] : memref<1x128xf32, #tpu.memory_space<vmem>>, vector<1x128xf32>
    %13 = arith.mulf %11, %4 : vector<4x128xf32>
    %cst_8 = arith.constant dense<0.000000e+00> : vector<128xf32>
    %14 = vector.multi_reduction <add>, %13, %cst_8 [0] : vector<4x128xf32> to vector<128xf32>
    %15 = vector.shape_cast %14 : vector<128xf32> to vector<1x128xf32>
    %16 = arith.addf %12, %15 : vector<1x128xf32>
    %c0_9 = arith.constant 0 : index
    %c0_10 = arith.constant 0 : index
    %17 = vector.load %arg4[%c0_9, %c0_10] : memref<1x128xf32, #tpu.memory_space<vmem>>, vector<1x128xf32>
    tpu.vector_store %arg4[%c0_9, %c0_10], %16 {strides = array<i32>} : memref<1x128xf32, #tpu.memory_space<vmem>>, vector<1x128xf32>,
    %c0_11 = arith.constant 0 : index
    %c0_12 = arith.constant 0 : index
    %18 = vector.load %arg5[%c0_11, %c0_12] : memref<1x128xf32, #tpu.memory_space<vmem>>, vector<1x128xf32>
    %cst_13 = arith.constant dense<0.000000e+00> : vector<128xf32>
    %19 = vector.multi_reduction <add>, %11, %cst_13 [0] : vector<4x128xf32> to vector<128xf32>
    %20 = vector.shape_cast %19 : vector<128xf32> to vector<1x128xf32>
    %21 = arith.addf %18, %20 : vector<1x128xf32>
    %c0_14 = arith.constant 0 : index
    %c0_15 = arith.constant 0 : index
    %22 = vector.load %arg5[%c0_14, %c0_15] : memref<1x128xf32, #tpu.memory_space<vmem>>, vector<1x128xf32>
    tpu.vector_store %arg5[%c0_14, %c0_15], %21 {strides = array<i32>} : memref<1x128xf32, #tpu.memory_space<vmem>>, vector<1x128xf32>,
    %c0_16 = arith.constant 0 : index
    %c0_17 = arith.constant 0 : index
    %23 = vector.load %arg6[%c0_16, %c0_17] : memref<1x128xf32, #tpu.memory_space<vmem>>, vector<1x128xf32>
    %cst_18 = arith.constant dense<0.000000e+00> : vector<128xf32>
    %24 = vector.multi_reduction <add>, %4, %cst_18 [0] : vector<4x128xf32> to vector<128xf32>
    %25 = vector.shape_cast %24 : vector<128xf32> to vector<1x128xf32>
    %26 = arith.addf %23, %25 : vector<1x128xf32>
    %c0_19 = arith.constant 0 : index
    %c0_20 = arith.constant 0 : index
    %27 = vector.load %arg6[%c0_19, %c0_20] : memref<1x128xf32, #tpu.memory_space<vmem>>, vector<1x128xf32>
    tpu.vector_store %arg6[%c0_19, %c0_20], %26 {strides = array<i32>} : memref<1x128xf32, #tpu.memory_space<vmem>>, vector<1x128xf32>,
    %c0_i32_21 = arith.constant 0 : i32
    %28 = arith.cmpi eq, %arg0, %c0_i32_21 : i32
    %29 = arith.extui %28 : i1 to i32
    %c0_i32_22 = arith.constant 0 : i32
    %30 = arith.cmpi ne, %29, %c0_i32_22 : i32
    scf.if %30 {
      %c0_23 = arith.constant 0 : index
      %c0_24 = arith.constant 0 : index
      %31 = vector.load %arg4[%c0_23, %c0_24] : memref<1x128xf32, #tpu.memory_space<vmem>>, vector<1x16xf32>
      %c0_25 = arith.constant 0 : index
      %c16 = arith.constant 16 : index
      %32 = vector.load %arg4[%c0_25, %c16] : memref<1x128xf32, #tpu.memory_space<vmem>>, vector<1x16xf32>
      %33 = arith.addf %31, %32 : vector<1x16xf32>
      %c0_26 = arith.constant 0 : index
      %c32 = arith.constant 32 : index
      %34 = vector.load %arg4[%c0_26, %c32] : memref<1x128xf32, #tpu.memory_space<vmem>>, vector<1x16xf32>
      %35 = arith.addf %33, %34 : vector<1x16xf32>
      %c0_27 = arith.constant 0 : index
      %c48 = arith.constant 48 : index
      %36 = vector.load %arg4[%c0_27, %c48] : memref<1x128xf32, #tpu.memory_space<vmem>>, vector<1x16xf32>
      %37 = arith.addf %35, %36 : vector<1x16xf32>
      %c0_28 = arith.constant 0 : index
      %c64 = arith.constant 64 : index
      %38 = vector.load %arg4[%c0_28, %c64] : memref<1x128xf32, #tpu.memory_space<vmem>>, vector<1x16xf32>
      %39 = arith.addf %37, %38 : vector<1x16xf32>
      %c0_29 = arith.constant 0 : index
      %c80 = arith.constant 80 : index
      %40 = vector.load %arg4[%c0_29, %c80] : memref<1x128xf32, #tpu.memory_space<vmem>>, vector<1x16xf32>
      %41 = arith.addf %39, %40 : vector<1x16xf32>
      %c0_30 = arith.constant 0 : index
      %c96 = arith.constant 96 : index
      %42 = vector.load %arg4[%c0_30, %c96] : memref<1x128xf32, #tpu.memory_space<vmem>>, vector<1x16xf32>
      %43 = arith.addf %41, %42 : vector<1x16xf32>
      %c0_31 = arith.constant 0 : index
      %c112 = arith.constant 112 : index
      %44 = vector.load %arg4[%c0_31, %c112] : memref<1x128xf32, #tpu.memory_space<vmem>>, vector<1x16xf32>
      %45 = arith.addf %43, %44 : vector<1x16xf32>
      %c0_32 = arith.constant 0 : index
      %c0_33 = arith.constant 0 : index
      %46 = vector.load %arg5[%c0_32, %c0_33] : memref<1x128xf32, #tpu.memory_space<vmem>>, vector<1x16xf32>
      %c0_34 = arith.constant 0 : index
      %c16_35 = arith.constant 16 : index
      %47 = vector.load %arg5[%c0_34, %c16_35] : memref<1x128xf32, #tpu.memory_space<vmem>>, vector<1x16xf32>
      %48 = arith.addf %46, %47 : vector<1x16xf32>
      %c0_36 = arith.constant 0 : index
      %c32_37 = arith.constant 32 : index
      %49 = vector.load %arg5[%c0_36, %c32_37] : memref<1x128xf32, #tpu.memory_space<vmem>>, vector<1x16xf32>
      %50 = arith.addf %48, %49 : vector<1x16xf32>
      %c0_38 = arith.constant 0 : index
      %c48_39 = arith.constant 48 : index
      %51 = vector.load %arg5[%c0_38, %c48_39] : memref<1x128xf32, #tpu.memory_space<vmem>>, vector<1x16xf32>
      %52 = arith.addf %50, %51 : vector<1x16xf32>
      %c0_40 = arith.constant 0 : index
      %c64_41 = arith.constant 64 : index
      %53 = vector.load %arg5[%c0_40, %c64_41] : memref<1x128xf32, #tpu.memory_space<vmem>>, vector<1x16xf32>
      %54 = arith.addf %52, %53 : vector<1x16xf32>
      %c0_42 = arith.constant 0 : index
      %c80_43 = arith.constant 80 : index
      %55 = vector.load %arg5[%c0_42, %c80_43] : memref<1x128xf32, #tpu.memory_space<vmem>>, vector<1x16xf32>
      %56 = arith.addf %54, %55 : vector<1x16xf32>
      %c0_44 = arith.constant 0 : index
      %c96_45 = arith.constant 96 : index
      %57 = vector.load %arg5[%c0_44, %c96_45] : memref<1x128xf32, #tpu.memory_space<vmem>>, vector<1x16xf32>
      %58 = arith.addf %56, %57 : vector<1x16xf32>
      %c0_46 = arith.constant 0 : index
      %c112_47 = arith.constant 112 : index
      %59 = vector.load %arg5[%c0_46, %c112_47] : memref<1x128xf32, #tpu.memory_space<vmem>>, vector<1x16xf32>
      %60 = arith.addf %58, %59 : vector<1x16xf32>
      %c0_48 = arith.constant 0 : index
      %c0_49 = arith.constant 0 : index
      %61 = vector.load %arg6[%c0_48, %c0_49] : memref<1x128xf32, #tpu.memory_space<vmem>>, vector<1x16xf32>
      %c0_50 = arith.constant 0 : index
      %c16_51 = arith.constant 16 : index
      %62 = vector.load %arg6[%c0_50, %c16_51] : memref<1x128xf32, #tpu.memory_space<vmem>>, vector<1x16xf32>
      %63 = arith.addf %61, %62 : vector<1x16xf32>
      %c0_52 = arith.constant 0 : index
      %c32_53 = arith.constant 32 : index
      %64 = vector.load %arg6[%c0_52, %c32_53] : memref<1x128xf32, #tpu.memory_space<vmem>>, vector<1x16xf32>
      %65 = arith.addf %63, %64 : vector<1x16xf32>
      %c0_54 = arith.constant 0 : index
      %c48_55 = arith.constant 48 : index
      %66 = vector.load %arg6[%c0_54, %c48_55] : memref<1x128xf32, #tpu.memory_space<vmem>>, vector<1x16xf32>
      %67 = arith.addf %65, %66 : vector<1x16xf32>
      %c0_56 = arith.constant 0 : index
      %c64_57 = arith.constant 64 : index
      %68 = vector.load %arg6[%c0_56, %c64_57] : memref<1x128xf32, #tpu.memory_space<vmem>>, vector<1x16xf32>
      %69 = arith.addf %67, %68 : vector<1x16xf32>
      %c0_58 = arith.constant 0 : index
      %c80_59 = arith.constant 80 : index
      %70 = vector.load %arg6[%c0_58, %c80_59] : memref<1x128xf32, #tpu.memory_space<vmem>>, vector<1x16xf32>
      %71 = arith.addf %69, %70 : vector<1x16xf32>
      %c0_60 = arith.constant 0 : index
      %c96_61 = arith.constant 96 : index
      %72 = vector.load %arg6[%c0_60, %c96_61] : memref<1x128xf32, #tpu.memory_space<vmem>>, vector<1x16xf32>
      %73 = arith.addf %71, %72 : vector<1x16xf32>
      %c0_62 = arith.constant 0 : index
      %c112_63 = arith.constant 112 : index
      %74 = vector.load %arg6[%c0_62, %c112_63] : memref<1x128xf32, #tpu.memory_space<vmem>>, vector<1x16xf32>
      %75 = arith.addf %73, %74 : vector<1x16xf32>
      %76 = arith.subf %75, %45 : vector<1x16xf32>
      %77 = arith.subf %60, %45 : vector<1x16xf32>
      %cst_64 = arith.constant 2.000000e+00 : f32
      %78 = vector.broadcast %cst_64 : f32 to vector<1x16xf32>
      %79 = arith.mulf %78, %45 : vector<1x16xf32>
      %cst_65 = arith.constant 2.000000e+00 : f32
      %80 = vector.broadcast %cst_65 : f32 to vector<1x16xf32>
      %81 = arith.mulf %80, %45 : vector<1x16xf32>
      %82 = arith.addf %81, %76 : vector<1x16xf32>
      %83 = arith.addf %82, %77 : vector<1x16xf32>
      %cst_66 = arith.constant 9.99999993E-9 : f32
      %84 = vector.broadcast %cst_66 : f32 to vector<1x16xf32>
      %85 = arith.addf %83, %84 : vector<1x16xf32>
      %86 = arith.divf %79, %85 : vector<1x16xf32>
      %cst_67 = arith.constant 1.000000e+00 : f32
      %87 = vector.broadcast %cst_67 : f32 to vector<1x16xf32>
      %88 = arith.subf %87, %86 : vector<1x16xf32>
      %cst_68 = arith.constant 3.200000e+01 : f32
      %89 = vector.broadcast %cst_68 : f32 to vector<1x16xf32>
      %90 = arith.subf %89, %60 : vector<1x16xf32>
      %91 = arith.subf %90, %75 : vector<1x16xf32>
      %92 = arith.addf %91, %45 : vector<1x16xf32>
      %cst_69 = arith.constant 2.000000e+00 : f32
      %93 = vector.broadcast %cst_69 : f32 to vector<1x16xf32>
      %94 = arith.mulf %93, %92 : vector<1x16xf32>
      %cst_70 = arith.constant 2.000000e+00 : f32
      %95 = vector.broadcast %cst_70 : f32 to vector<1x16xf32>
      %96 = arith.mulf %95, %92 : vector<1x16xf32>
      %97 = arith.addf %96, %76 : vector<1x16xf32>
      %98 = arith.addf %97, %77 : vector<1x16xf32>
      %cst_71 = arith.constant 9.99999993E-9 : f32
      %99 = vector.broadcast %cst_71 : f32 to vector<1x16xf32>
      %100 = arith.addf %98, %99 : vector<1x16xf32>
      %101 = arith.divf %94, %100 : vector<1x16xf32>
      %cst_72 = arith.constant 1.000000e+00 : f32
      %102 = vector.broadcast %cst_72 : f32 to vector<1x16xf32>
      %103 = arith.subf %102, %101 : vector<1x16xf32>
      %104 = arith.addf %88, %103 : vector<1x16xf32>
      %cst_73 = arith.constant 5.000000e-01 : f32
      %105 = vector.broadcast %cst_73 : f32 to vector<1x16xf32>
      %106 = arith.mulf %104, %105 : vector<1x16xf32>
      %cst_74 = arith.constant 0.000000e+00 : f32
      %107 = vector.broadcast %cst_74 : f32 to vector<1x128xf32>
      %108 = vector.shape_cast %106 : vector<1x16xf32> to vector<1x1x16xf32>
      %cst_75 = arith.constant dense<0.000000e+00> : vector<1xf32>
      %109 = vector.multi_reduction <add>, %108, %cst_75 [1, 2] : vector<1x1x16xf32> to vector<1xf32>
      %110 = vector.shape_cast %109 : vector<1xf32> to vector<1x1x1xf32>
      %111 = vector.extract %110[0, 0, 0] : f32 from vector<1x1x1xf32>
      %cst_76 = arith.constant 1.600000e+01 : f32
      %112 = arith.divf %111, %cst_76 : f32
      %113 = vector.broadcast %112 : f32 to vector<1x128xf32>
      %114 = arith.addf %107, %113 : vector<1x128xf32>
      %c0_77 = arith.constant 0 : index
      %c0_78 = arith.constant 0 : index
      %115 = vector.load %arg3[%c0_77, %c0_78] : memref<1x128xf32, #tpu.memory_space<vmem>>, vector<1x128xf32>
      tpu.vector_store %arg3[%c0_77, %c0_78], %114 {strides = array<i32>} : memref<1x128xf32, #tpu.memory_space<vmem>>, vector<1x128xf32>,
    } else {
    }
    return
  }
  func.func @transform_0(%arg0: i32) -> (i32, i32) {
    %c0_i32 = arith.constant 0 : i32
    %c0_i32_0 = arith.constant 0 : i32
    return %arg0, %c0_i32 : i32, i32
  }
  func.func @transform_1(%arg0: i32) -> (i32, i32) {
    %c0_i32 = arith.constant 0 : i32
    %c0_i32_0 = arith.constant 0 : i32
    return %arg0, %c0_i32 : i32, i32
  }
  func.func @transform_2(%arg0: i32) -> (i32, i32) {
    %c0_i32 = arith.constant 0 : i32
    %c0_i32_0 = arith.constant 0 : i32
    %c0_i32_1 = arith.constant 0 : i32
    return %c0_i32, %c0_i32_0 : i32, i32
  }
}

</mosaic_0001>

<llo_original>
// kernel: tpu_custom_call.1
$region0: #{tpu_custom_call.1}
  #allocation0 [shape = 'u32[]', space=smem, size = 0x4, offset = 0x4, fixed_abs, tag = 'smem constant byte address 0x4 - core index']
  #allocation1 [shape = 'u32[144,128]{1,0:T(1,128)}', space=vmem, size = 0x12000, scoped, tag = 'internal scratch']
  #allocation2 [shape = 'f32[1,128]{1,0:T(1,128)}', space=vmem, size = 0x200, scoped, tag = 'scratch operand']
  #allocation3 [shape = 'f32[1,128]{1,0:T(1,128)}', space=vmem, size = 0x200, scoped, tag = 'scratch operand']
  #allocation4 [shape = 'f32[1,128]{1,0:T(1,128)}', space=vmem, size = 0x200, scoped, tag = 'scratch operand']
  %s0 = inlined_call_operand.hbm [shape: f32[4,128], index: 0, kind: input, shape index: {}]
  %s1 = inlined_call_operand.hbm [shape: f32[4,128], index: 1, kind: input, shape index: {}]
  %s2 = inlined_call_operand.hbm [shape: f32[1,128], index: 2, kind: output, shape index: {}]
  %s3 = sld [smem:[#allocation0]]
  $region34: #{tpu_custom_call.1} parent=0
    _
  %s5 = ssub.s32 1, %s3
  %s6 = scalar_select 0, %s5, %s3
  $region1: #{tpu_custom_call.1} parent=0
    #allocation5 [shape = 'u8[2048]{0}', space=vmem, size = 0x800, scoped, tag = 'input window, operand 0, single buffered']
    #allocation6 [shape = 's32[1]{0}', space=sflag, size = 0x4, scoped, tag = 'scoped memory for tpu_custom_call.1']
    #allocation7 [shape = 's32[1]{0}', space=sflag, size = 0x4, scoped, tag = 'scoped memory for tpu_custom_call.1']
    #allocation8 [shape = 'u8[2048]{0}', space=vmem, size = 0x800, scoped, tag = 'input window, operand 1, single buffered']
    #allocation9 [shape = 's32[1]{0}', space=sflag, size = 0x4, scoped, tag = 'scoped memory for tpu_custom_call.1']
    #allocation10 [shape = 'u8[512]{0}', space=vmem, size = 0x400, scoped, tag = 'output window, operand 0, single buffered']
    %7 = vsyncpa [#allocation6], 0
    %8 = vsyncpa [#allocation9], 0
    %9 = vsyncpa [#allocation7], 0
    // Predicated region
    $region2: #{tpu_custom_call.1} parent=1 // pred_check
      _
    $region3: #{tpu_custom_call.1} parent=1 // pred_check_branch
      %11 = sbr.rel (0) target = $region5
    $region4: #{tpu_custom_call.1} parent=1 // pred_region
      %s13 = ssub.s32 64, 64
      %14 = vsyncadd [#allocation6], %s13
      %s16 = sshll.u32 [#allocation5], 4
      %s17 = int_to_ptr.vmem [resolvable:$true] %s16
      %19 = dma.hbm_to_vmem [thread:$0]  %s0, 64, %s17, [#allocation6]
    $region5: #{tpu_custom_call.1} parent=1 // pred_fallthru
      _
    // Predicated region
    $region6: #{tpu_custom_call.1} parent=1 // pred_check
      _
    $region7: #{tpu_custom_call.1} parent=1 // pred_check_branch
      %21 = sbr.rel (0) target = $region9
    $region8: #{tpu_custom_call.1} parent=1 // pred_region
      %s23 = ssub.s32 64, 64
      %24 = vsyncadd [#allocation9], %s23
      %s26 = sshll.u32 [#allocation8], 4
      %s27 = int_to_ptr.vmem [resolvable:$true] %s26
      %29 = dma.hbm_to_vmem [thread:$0]  %s1, 64, %s27, [#allocation9]
    $region9: #{tpu_custom_call.1} parent=1 // pred_fallthru
      _
    // Predicated region
    $region10: #{tpu_custom_call.1} parent=1 // pred_check
      _
    $region11: #{tpu_custom_call.1} parent=1 // pred_check_branch
      %31 = sbr.rel (0) target = $region13
    $region12: #{tpu_custom_call.1} parent=1 // pred_region
      %32 = dma.done [#allocation6], 64
    $region13: #{tpu_custom_call.1} parent=1 // pred_fallthru
      _
    // Predicated region
    $region14: #{tpu_custom_call.1} parent=1 // pred_check
      _
    $region15: #{tpu_custom_call.1} parent=1 // pred_check_branch
      %34 = sbr.rel (0) target = $region17
    $region16: #{tpu_custom_call.1} parent=1 // pred_region
      %35 = dma.done [#allocation9], 64
    $region17: #{tpu_custom_call.1} parent=1 // pred_fallthru
      _
    %p36 = scmp.eq.s32.totalorder 0, 0
    // Predicated region
    $region18: #{tpu_custom_call.1} parent=1 // pred_check
      %p37 = pneg %p36
    $region19: #{tpu_custom_call.1} parent=1 // pred_check_branch
      %39 = sbr.rel (%p37) target = $region21
    $region20: #{tpu_custom_call.1} parent=1 // pred_region
      %40 = vst [vmem:[#allocation2] sm:$0x1] 0.0
      %41 = vst [vmem:[#allocation3] sm:$0x1] 0.0
      %42 = vst [vmem:[#allocation4] sm:$0x1] 0.0
    $region21: #{tpu_custom_call.1} parent=1 // pred_fallthru
      _
    %v43 = vld [vmem:[#allocation5] sm:$0xf]
    %v44 = vld [vmem:[#allocation8] sm:$0xf]
    %v45 = vmul.f32 %v43, 0.5
    %v46 = vtanh.pop %v45
    %v47 = vmul.f32 %v46, 0.5
    %v48 = vadd.f32 %v47, 0.5
    %v49 = vld [vmem:[#allocation2] sm:$0x1]
    %v50 = vmul.f32 %v48, %v44
    %vm51 = vcmask 1043456
    %v52 = vsel %vm51, %v50, 0.0
    %v53 = vrot.slane %v52, 4
    %v54 = vadd.f32 %v52, %v53
    %v55 = vrot.slane %v54, 2
    %v56 = vadd.f32 %v54, %v55
    %v57 = vrot.slane %v56, 1
    %v58 = vadd.f32 %v56, %v57
    %v59 = vadd.f32 %v49, %v58
    %60 = vst [vmem:[#allocation2] sm:$0x1] %v59
    %v61 = vld [vmem:[#allocation3] sm:$0x1]
    %v62 = vsel %vm51, %v48, 0.0
    %v63 = vrot.slane %v62, 4
    %v64 = vadd.f32 %v62, %v63
    %v65 = vrot.slane %v64, 2
    %v66 = vadd.f32 %v64, %v65
    %v67 = vrot.slane %v66, 1
    %v68 = vadd.f32 %v66, %v67
    %v69 = vadd.f32 %v61, %v68
    %70 = vst [vmem:[#allocation3] sm:$0x1] %v69
    %v71 = vld [vmem:[#allocation4] sm:$0x1]
    %v72 = vsel %vm51, %v44, 0.0
    %v73 = vrot.slane %v72, 4
    %v74 = vadd.f32 %v72, %v73
    %v75 = vrot.slane %v74, 2
    %v76 = vadd.f32 %v74, %v75
    %v77 = vrot.slane %v76, 1
    %v78 = vadd.f32 %v76, %v77
    %v79 = vadd.f32 %v71, %v78
    %80 = vst [vmem:[#allocation4] sm:$0x1] %v79
    // Predicated region
    $region22: #{tpu_custom_call.1} parent=1 // pred_check
      %p81 = pneg %p36
    $region23: #{tpu_custom_call.1} parent=1 // pred_check_branch
      %83 = sbr.rel (%p81) target = $region25
    $region24: #{tpu_custom_call.1} parent=1 // pred_region
      %v84 = vld [vmem:[#allocation2] sm:$0x1]
      %86 = vrot.lane.b32.xlu0 %v84, 112
      %v87 = vpop.permute.xlu0 %86
      %v89 = vadd.f32 %v84, %v87
      %90 = vrot.lane.b32.xlu0 %v84, 96
      %v91 = vpop.permute.xlu0 %90
      %v93 = vadd.f32 %v89, %v91
      %94 = vrot.lane.b32.xlu0 %v84, 80
      %v95 = vpop.permute.xlu0 %94
      %v97 = vadd.f32 %v93, %v95
      %98 = vrot.lane.b32.xlu0 %v84, 64
      %v99 = vpop.permute.xlu0 %98
      %v101 = vadd.f32 %v97, %v99
      %102 = vrot.lane.b32.xlu0 %v84, 48
      %v103 = vpop.permute.xlu0 %102
      %v105 = vadd.f32 %v101, %v103
      %106 = vrot.lane.b32.xlu0 %v84, 32
      %v107 = vpop.permute.xlu0 %106
      %v109 = vadd.f32 %v105, %v107
      %110 = vrot.lane.b32.xlu0 %v84, 16
      %v111 = vpop.permute.xlu0 %110
      %v113 = vadd.f32 %v109, %v111
      %v114 = vld [vmem:[#allocation3] sm:$0x1]
      %116 = vrot.lane.b32.xlu0 %v114, 112
      %v117 = vpop.permute.xlu0 %116
      %v119 = vadd.f32 %v114, %v117
      %120 = vrot.lane.b32.xlu0 %v114, 96
      %v121 = vpop.permute.xlu0 %120
      %v123 = vadd.f32 %v119, %v121
      %124 = vrot.lane.b32.xlu0 %v114, 80
      %v125 = vpop.permute.xlu0 %124
      %v127 = vadd.f32 %v123, %v125
      %128 = vrot.lane.b32.xlu0 %v114, 64
      %v129 = vpop.permute.xlu0 %128
      %v131 = vadd.f32 %v127, %v129
      %132 = vrot.lane.b32.xlu0 %v114, 48
      %v133 = vpop.permute.xlu0 %132
      %v135 = vadd.f32 %v131, %v133
      %136 = vrot.lane.b32.xlu0 %v114, 32
      %v137 = vpop.permute.xlu0 %136
      %v139 = vadd.f32 %v135, %v137
      %140 = vrot.lane.b32.xlu0 %v114, 16
      %v141 = vpop.permute.xlu0 %140
      %v143 = vadd.f32 %v139, %v141
      %v144 = vld [vmem:[#allocation4] sm:$0x1]
      %146 = vrot.lane.b32.xlu0 %v144, 112
      %v147 = vpop.permute.xlu0 %146
      %v149 = vadd.f32 %v144, %v147
      %150 = vrot.lane.b32.xlu0 %v144, 96
      %v151 = vpop.permute.xlu0 %150
      %v153 = vadd.f32 %v149, %v151
      %154 = vrot.lane.b32.xlu0 %v144, 80
      %v155 = vpop.permute.xlu0 %154
      %v157 = vadd.f32 %v153, %v155
      %158 = vrot.lane.b32.xlu0 %v144, 64
      %v159 = vpop.permute.xlu0 %158
      %v161 = vadd.f32 %v157, %v159
      %162 = vrot.lane.b32.xlu0 %v144, 48
      %v163 = vpop.permute.xlu0 %162
      %v165 = vadd.f32 %v161, %v163
      %166 = vrot.lane.b32.xlu0 %v144, 32
      %v167 = vpop.permute.xlu0 %166
      %v169 = vadd.f32 %v165, %v167
      %170 = vrot.lane.b32.xlu0 %v144, 16
      %v171 = vpop.permute.xlu0 %170
      %v173 = vadd.f32 %v169, %v171
      %v174 = vsub.f32 %v173, %v113
      %v175 = vsub.f32 %v143, %v113
      %v176 = vmul.f32 %v113, 2.0
      %v177 = vadd.f32 %v176, %v174
      %v178 = vadd.f32 %v177, %v175
      %v179 = vadd.f32 %v178, 1e-08
      %v180 = vrcp.pop %v179
      %v181 = vmul.f32 %v176, %v180
      %v182 = vsub.f32 1.0, %v181
      %v183 = vsub.f32 32.0, %v143
      %v184 = vsub.f32 %v183, %v173
      %v185 = vadd.f32 %v184, %v113
      %v186 = vmul.f32 %v185, 2.0
      %v187 = vadd.f32 %v186, %v174
      %v188 = vadd.f32 %v187, %v175
      %v189 = vadd.f32 %v188, 1e-08
      %v190 = vrcp.pop %v189
      %v191 = vmul.f32 %v186, %v190
      %v192 = vsub.f32 1.0, %v191
      %v193 = vadd.f32 %v182, %v192
      %v194 = vmul.f32 %v193, 0.5
      %vm195 = vcmask 122880
      %v196 = vsel %vm195, %v194, 0.0
      %197 = vadd.xlane.f32.xlu0 %v196
      %v198 = vpop.xlane.xlu0 %197
      %v199 = vrot.slane %v198, 4
      %v200 = vadd.f32 %v198, %v199
      %v201 = vrot.slane %v200, 2
      %v202 = vadd.f32 %v200, %v201
      %v203 = vrot.slane %v202, 1
      %v204 = vadd.f32 %v202, %v203
      %s205 = vtos %v204
      %v206 = vrcp.pop 16.0
      %s207 = vtos %v206
      %s208 = smul.f32 %s205, %s207
      %v209 = vstv %s208
      %v210 = vadd.f32 %v209, 0.0
      %211 = vst [vmem:[#allocation10] sm:$0x1] %v210
    $region25: #{tpu_custom_call.1} parent=1 // pred_fallthru
      _
    // Predicated region
    $region26: #{tpu_custom_call.1} parent=1 // pred_check
      _
    $region27: #{tpu_custom_call.1} parent=1 // pred_check_branch
      %213 = sbr.rel (0) target = $region29
    $region28: #{tpu_custom_call.1} parent=1 // pred_region
      %s215 = ssub.s32 16, 16
      %216 = vsyncadd [#allocation7], %s215
      %s218 = sshll.u32 [#allocation10], 4
      %s219 = int_to_ptr.vmem [resolvable:$true] %s218
      %221 = dma.vmem_to_hbm [thread:$0]  %s219, 16, %s2, [#allocation7]
    $region29: #{tpu_custom_call.1} parent=1 // pred_fallthru
      _
    // Predicated region
    $region30: #{tpu_custom_call.1} parent=1 // pred_check
      _
    $region31: #{tpu_custom_call.1} parent=1 // pred_check_branch
      %223 = sbr.rel (0) target = $region33
    $region32: #{tpu_custom_call.1} parent=1 // pred_region
      %224 = dma.done [#allocation7], 16
    $region33: #{tpu_custom_call.1} parent=1 // pred_fallthru
      _
    %225 = vsyncpa [#allocation6], 1
    %226 = vsyncpa [#allocation9], 1
    %227 = vsyncpa [#allocation7], 1

</llo_original>
